<compile_context>
chip_gen: v6e
topology: v6e:2x2x1
jax: 0.10.0
libtpu: 0.0.40
codegen_flags: <defaults>
</compile_context>

<pallas_src>
import functools

import numpy as np

import jax
import jax.numpy as jnp
from jax.experimental import pallas as pl
from jax.experimental.pallas import tpu as pltpu

_EPS = 1e-5          # BatchNorm eps (PyTorch default)
_K_GROUPS = 8        # MixedOp.K
_NUM_PRIMS = 8       # len(PRIMITIVES)

# Packed depthwise / pointwise weight layout (identical for every branch).
_DW_ITEMS = (("sep3_dw1", 3), ("sep3_dw2", 3), ("sep5_dw1", 5), ("sep5_dw2", 5),
             ("dil3_dw", 3), ("dil5_dw", 5))
_DW_OFF = {}
_pos = 0
for _name, _k in _DW_ITEMS:
    _DW_OFF[_name] = _pos
    _pos += _k * _k
_N_DW = _pos
_PW_ITEMS = ("sep3_pw1", "sep3_pw2", "sep5_pw1", "sep5_pw2", "dil3_pw", "dil5_pw")


# -----------------------------------------------------------------------------
# One-off calibration: which way does pltpu.roll rotate on this build?
# We need tap(x, s)[f] == x[f + s]; return m such that
# pltpu.roll(x, (m * s) % N, axis=-1) delivers exactly that.
# -----------------------------------------------------------------------------
@functools.lru_cache(maxsize=None)
def _roll_gather_sign():
    def kern(x_ref, o_ref):
        o_ref[...] = pltpu.roll(x_ref[...], 1, axis=1)

    x = jnp.broadcast_to(jnp.arange(128, dtype=jnp.float32), (8, 128))
    r = pl.pallas_call(
        kern,
        out_shape=jax.ShapeDtypeStruct((8, 128), jnp.float32),
        in_specs=[pl.BlockSpec(memory_space=pltpu.MemorySpace.VMEM)],
        out_specs=pl.BlockSpec(memory_space=pltpu.MemorySpace.VMEM),
    )(x)
    v = float(r[0, 1])
    if v == 0.0:          # jnp.roll convention: r[i] = x[i - shift]
        return -1
    if v == 2.0:          # opposite convention: r[i] = x[i + shift]
        return 1
    raise RuntimeError(f"unexpected pltpu.roll convention (probe value {v})")


# -----------------------------------------------------------------------------
# Host-precomputed static tables for the flat (C, B*H*W) layout.
# -----------------------------------------------------------------------------
@functools.lru_cache(maxsize=None)
def _static_tables(B, H, W):
    N = B * H * W
    f = np.arange(N)
    hw = f % (H * W)
    hp, wp = hw // W, hw % W

    offs = set()
    for k, dil in ((3, 1), (5, 1), (3, 2), (5, 2)):
        pad = dil * (k - 1) // 2
        for kh in range(k):
            for kw in range(k):
                offs.add((kh * dil - pad, kw * dil - pad))
    offs.discard((0, 0))
    offs = sorted(offs)
    mask_idx = {o: i for i, o in enumerate(offs)}

    mm = np.zeros((len(offs), N), np.float32)        # 1.0 where shifted tap is in-image
    for i, (oh, ow) in enumerate(offs):
        valid = (hp + oh >= 0) & (hp + oh < H) & (wp + ow >= 0) & (wp + ow < W)
        mm[i] = valid.astype(np.float32)

    pool_offs = [(oh, ow) for oh in (-1, 0, 1) for ow in (-1, 0, 1) if (oh, ow) != (0, 0)]
    pool_add_idx = {o: i for i, o in enumerate(pool_offs)}
    ma = np.zeros((len(pool_offs), N), np.float32)   # 0 valid / -1e30 invalid (max pad)
    cnt = np.ones(N, np.float32)                     # center tap always valid
    for i, o in enumerate(pool_offs):
        valid = mm[mask_idx[o]] > 0.0
        ma[i] = np.where(valid, 0.0, -1e30)
        cnt += valid
    inv_cnt = (1.0 / cnt).reshape(1, N).astype(np.float32)

    return (jnp.asarray(mm), jnp.asarray(ma), jnp.asarray(inv_cnt),
            mask_idx, pool_add_idx)


# -----------------------------------------------------------------------------
# The fused cell kernel.  One grid step == one MixedOp branch of the DAG.
# Layout: every activation is (channels, B*H*W); channels on sublanes, flat
# spatial index on lanes.
# -----------------------------------------------------------------------------
def _cell_kernel(meta_ref, alpha_ref, gamma_ref,                  # SMEM (scalar prefetch)
                 x_ref, pre_w_ref, dw_ref, pw_ref, p1_ref, p2_ref,
                 mask_mul_ref, mask_add_ref, inv_cnt_ref,         # VMEM inputs
                 out_ref,                                         # (N, steps*C) output
                 st_ref,                                          # (steps+1, C, N) scratch
                 *, steps, W, Ck, N, roll_sign, mask_idx, pool_add_idx):
    b = pl.program_id(0)
    inv_n = 1.0 / N

    # ---- grid step 0: zero DAG states + fused ReLU -> 1x1 conv -> BN preprocess
    @pl.when(b == 0)
    def _():
        st_ref[...] = jnp.zeros_like(st_ref)
        xr = jnp.maximum(x_ref[...], 0.0)                                # (N, C_in)
        y = jax.lax.dot_general(pre_w_ref[...], xr,
                                dimension_numbers=(((1,), (1,)), ((), ())),
                                preferred_element_type=jnp.float32)      # (C, N)
        mu = jnp.sum(y, axis=1, keepdims=True) * inv_n
        d = y - mu
        var = jnp.sum(d * d, axis=1, keepdims=True) * inv_n
        st_ref[0] = d * jax.lax.rsqrt(var + _EPS)

    # ---- branch routing + packed weights for this branch
    in_idx = meta_ref[b, 0]
    out_idx = meta_ref[b, 1]
    h = st_ref[in_idx]                        # (C, N) dynamic state-slot read
    dwv = dw_ref[b]                           # (Ck, _N_DW) depthwise weights
    pwv = pw_ref[b]                           # (Ck, 6*Ck)  pointwise weights (C_out, C_in)

    xt = h[0:Ck, :]                           # (Ck, N) partial channels of the MixedOp
    xt_relu = jnp.maximum(xt, 0.0)

    def mrow(oh, ow):                         # (1, N) multiplicative boundary mask
        i = mask_idx[(oh, ow)]
        return mask_mul_ref[i:i + 1, :]

    def tap(src, oh, ow):                     # pos f holds src[f + oh*W + ow] (wraps masked)
        s = oh * W + ow
        if s == 0:
            return src
        return pltpu.roll(src, (roll_sign * s) % N, axis=1)

    def bn(v):                                # BatchNorm2d(affine=False), batch stats
        mu = jnp.sum(v, axis=1, keepdims=True) * inv_n
        d = v - mu
        var = jnp.sum(d * d, axis=1, keepdims=True) * inv_n
        return d * jax.lax.rsqrt(var + _EPS)

    def depthwise(src_relu, name, k, dil):    # KxK depthwise conv, stride 1, zero pad
        base = _DW_OFF[name]
        pad = dil * (k - 1) // 2
        acc, t = None, 0
        for kh in range(k):
            for kw in range(k):
                oh, ow = kh * dil - pad, kw * dil - pad
                v = tap(src_relu, oh, ow)
                if (oh, ow) != (0, 0):
                    v = v * mrow(oh, ow)                         # zero padding
                term = v * dwv[:, base + t:base + t + 1]         # per-channel weight
                acc = term if acc is None else acc + term
                t += 1
        return acc

    def pointwise(src, name):                 # 1x1 conv Ck->Ck on the VPU
        base = _PW_ITEMS.index(name) * Ck
        acc = None
        for ci in range(Ck):
            term = pwv[:, base + ci:base + ci + 1] * src[ci:ci + 1, :]
            acc = term if acc is None else acc + term
        return acc

    def sep_conv(k, p):                       # ReLU-DW-1x1-BN-ReLU-DW-1x1-BN
        r = depthwise(xt_relu, p + "_dw1", k, 1)
        r = bn(pointwise(r, p + "_pw1"))
        r = depthwise(jnp.maximum(r, 0.0), p + "_dw2", k, 1)
        return bn(pointwise(r, p + "_pw2"))

    def dil_conv(k, p):                       # ReLU - dilated DW - 1x1 - BN
        return bn(pointwise(depthwise(xt_relu, p + "_dw", k, 2), p + "_pw"))

    def pools():                              # 3x3 max / avg pool, stride 1, pad 1
        mx, sm = None, None
        for oh in (-1, 0, 1):
            for ow in (-1, 0, 1):
                v = tap(xt, oh, ow)
                if (oh, ow) == (0, 0):
                    vm, vs = v, v
                else:
                    j = pool_add_idx[(oh, ow)]
                    vm = v + mask_add_ref[j:j + 1, :]            # -1e30 padding for max
                    vs = v * mrow(oh, ow)                        # zero padding for avg
                mx = vm if mx is None else jnp.maximum(mx, vm)
                sm = vs if sm is None else sm + vs
        return mx, sm * inv_cnt_ref[...]                         # count_include_pad=False

    # ---- alpha-weighted sum of the primitives ('none' contributes exactly zero)
    mx, avg = pools()
    t1 = bn(mx) * alpha_ref[b, 1]                     # max_pool_3x3 (+ MixedOp BN)
    t1 = t1 + bn(avg) * alpha_ref[b, 2]               # avg_pool_3x3 (+ MixedOp BN)
    t1 = t1 + xt * alpha_ref[b, 3]                    # skip_connect (stride-1 identity)
    t1 = t1 + sep_conv(3, "sep3") * alpha_ref[b, 4]
    t1 = t1 + sep_conv(5, "sep5") * alpha_ref[b, 5]
    t1 = t1 + dil_conv(3, "dil3") * alpha_ref[b, 6]
    t1 = t1 + dil_conv(5, "dil5") * alpha_ref[b, 7]

    # ---- channel_shuffle folded into static placement matrices:
    #      contrib = gamma * (P1-placed weighted-sum rows + P2 @ h passthrough rows)
    placed = None
    for s in range(Ck):
        term = p1_ref[:, s:s + 1] * t1[s:s + 1, :]               # (C,1)*(1,N) -> (C,N)
        placed = term if placed is None else placed + term
    contrib = (placed +
               jnp.dot(p2_ref[...], h, preferred_element_type=jnp.float32)
               ) * gamma_ref[b]

    # ---- single full-tile accumulate into the target DAG state
    for so in range(1, steps + 1):
        @pl.when(out_idx == so)
        def _(so=so):
            st_ref[so] = st_ref[so] + contrib

    # ---- last branch: emit concat(states[-steps:]) directly in NHWC layout
    @pl.when(b == pl.num_programs(0) - 1)
    def _():
        res = jnp.concatenate([st_ref[s] for s in range(1, steps + 1)], axis=0)
        out_ref[...] = res.T                                     # (N, steps*C)


# -----------------------------------------------------------------------------
# Cell forward
# -----------------------------------------------------------------------------
def same_cell_forward(x, n_alphas, n_gamma, params, *, steps):
    """x: NHWC (B, H, W, C_in). Returns NHWC (B, H, W, steps * C_out)."""
    B, H, W, C_in = x.shape
    pre_w = params["pre_w"]
    C = pre_w.shape[0]
    assert C % _K_GROUPS == 0
    Ck = C // _K_GROUPS
    N = B * H * W
    nb = steps * (steps + 1) // 2

    mask_mul, mask_add, inv_cnt, mask_idx, pool_add_idx = _static_tables(B, H, W)

    # branch b -> (input state, output state); matches the PyTorch DAG order
    meta = jnp.asarray([(j, i + 1) for i in range(steps) for j in range(i + 1)],
                       dtype=jnp.int32)

    # channel_shuffle(K) as static placement matrices (out ch o <- src (o%K)*cpg + o//K)
    perm_src = [(o % _K_GROUPS) * Ck + o // _K_GROUPS for o in range(C)]
    p1 = np.zeros((C, Ck), np.float32)      # places the weighted-sum (t1) rows
    p2 = np.zeros((C, C), np.float32)       # places the passthrough rows of h
    for o, s in enumerate(perm_src):
        (p1 if s < Ck else p2)[o, s] = 1.0

    x_flat = x.reshape(N, C_in)             # reshape only, no XLA transpose

    kern = functools.partial(
        _cell_kernel, steps=steps, W=W, Ck=Ck, N=N,
        roll_sign=_roll_gather_sign(), mask_idx=mask_idx,
        pool_add_idx=pool_add_idx)

    grid_spec = pltpu.PrefetchScalarGridSpec(
        num_scalar_prefetch=3,              # meta, alphas, gammas -> SMEM
        grid=(nb,),
        in_specs=[
            pl.BlockSpec((N, C_in), lambda b, *_: (0, 0)),                         # x_flat
            pl.BlockSpec((C, C_in), lambda b, *_: (0, 0)),                         # pre_w
            pl.BlockSpec((nb, Ck, _N_DW), lambda b, *_: (0, 0, 0)),                # dw weights
            pl.BlockSpec((nb, Ck, len(_PW_ITEMS) * Ck), lambda b, *_: (0, 0, 0)),  # pw weights
            pl.BlockSpec((C, Ck), lambda b, *_: (0, 0)),                           # P1
            pl.BlockSpec((C, C), lambda b, *_: (0, 0)),                            # P2
            pl.BlockSpec(mask_mul.shape, lambda b, *_: (0, 0)),                    # mult. masks
            pl.BlockSpec(mask_add.shape, lambda b, *_: (0, 0)),                    # additive masks
            pl.BlockSpec((1, N), lambda b, *_: (0, 0)),                            # avg-pool 1/cnt
        ],
        out_specs=pl.BlockSpec((N, steps * C), lambda b, *_: (0, 0)),
        scratch_shapes=[pltpu.VMEM((steps + 1, C, N), jnp.float32)],
    )

    out = pl.pallas_call(
        kern,
        out_shape=jax.ShapeDtypeStruct((N, steps * C), jnp.float32),
        grid_spec=grid_spec,
        compiler_params=pltpu.CompilerParams(dimension_semantics=("arbitrary",)),
    )(meta, n_alphas.astype(jnp.float32), n_gamma.astype(jnp.float32),
      x_flat, pre_w, params["dw"], params["pw"],
      jnp.asarray(p1), jnp.asarray(p2), mask_mul, mask_add, inv_cnt)

    return out.reshape(B, H, W, steps * C)


# -----------------------------------------------------------------------------
# Parameter init (kaiming_normal_, matching the PyTorch module), pre-packed.
# Note: 1x1 (pointwise) matrices use PyTorch's (C_out, C_in) layout; depthwise
# weights are (Ck, K*K) row-major flattened from (Ck, 1, K, K).
# -----------------------------------------------------------------------------
def init_params(key, steps, filter_multiplier):
    C_in = int(filter_multiplier * steps)
    C = filter_multiplier
    Ck = C // _K_GROUPS
    nb = steps * (steps + 1) // 2
    keys = iter(jax.random.split(key, 8 + nb * (len(_DW_ITEMS) + len(_PW_ITEMS))))

    def kaiming(shape, fan_in):
        return jax.random.normal(next(keys), shape, jnp.float32) * (2.0 / fan_in) ** 0.5

    pre_w = kaiming((C, C_in), C_in)                     # preprocess 1x1, (C_out, C_in)

    dw_rows, pw_rows = [], []
    for _ in range(nb):
        dw_rows.append(jnp.concatenate(
            [kaiming((Ck, k * k), k * k) for _n, k in _DW_ITEMS], axis=1))
        pw_rows.append(jnp.concatenate(
            [kaiming((Ck, Ck), Ck) for _n in _PW_ITEMS], axis=1))
    return {"pre_w": pre_w,
            "dw": jnp.stack(dw_rows),                    # (nb, Ck, _N_DW)
            "pw": jnp.stack(pw_rows)}                    # (nb, Ck, 6*Ck)


# -----------------------------------------------------------------------------
if __name__ == "__main__":
    steps, filter_multiplier = 3, 16
    B, H, W = 2, 16, 16
    C_in = filter_multiplier * steps               # 48
    num_branches = steps * (steps + 1) // 2        # 6

    key = jax.random.PRNGKey(0)
    kx, ka, kg, kp = jax.random.split(key, 4)
    x = jax.random.normal(kx, (B, H, W, C_in), jnp.float32)          # NHWC
    n_alphas = jax.nn.softmax(
        jax.random.normal(ka, (num_branches, _NUM_PRIMS), jnp.float32), axis=-1)
    n_gamma = jax.random.uniform(kg, (num_branches,), jnp.float32)
    params = init_params(kp, steps, filter_multiplier)

    _ = _roll_gather_sign()    # run the tiny calibration kernel eagerly once

    fwd = jax.jit(functools.partial(same_cell_forward, steps=steps))
    out = fwd(x, n_alphas, n_gamma, params)
    jax.block_until_ready(out)
    assert out.shape == (B, H, W, steps * filter_multiplier)
    assert bool(jnp.all(jnp.isfinite(out)))
    print("KERNEL_OK")
</pallas_src>

<mosaic_0001>
module attributes {stable_mosaic.version = 11 : i64} {
  func.func @kern(%arg0: memref<8x128xf32, #tpu.memory_space<vmem>>, %arg1: memref<8x128xf32, #tpu.memory_space<vmem>>) attributes {dimension_semantics = [], scalar_prefetch = 0 : i64, scratch_operands = 0 : i64, tpu.core_type = #tpu.core_type<tc>} {
    %c0 = arith.constant 0 : index
    %c0_0 = arith.constant 0 : index
    %0 = vector.load %arg0[%c0, %c0_0] : memref<8x128xf32, #tpu.memory_space<vmem>>, vector<8x128xf32>
    %c1_i32 = arith.constant 1 : i32
    %1 = tpu.dynamic_rotate %0 by %c1_i32 dim 1 : vector<8x128xf32>, i32 -> vector<8x128xf32>
    %c0_1 = arith.constant 0 : index
    %c0_2 = arith.constant 0 : index
    %2 = vector.load %arg1[%c0_1, %c0_2] : memref<8x128xf32, #tpu.memory_space<vmem>>, vector<8x128xf32>
    tpu.vector_store %arg1[%c0_1, %c0_2], %1 {strides = array<i32>} : memref<8x128xf32, #tpu.memory_space<vmem>>, vector<8x128xf32>,
    return
  }
}

</mosaic_0001>

<llo_original>
// kernel: tpu_custom_call.1
$region0: #{tpu_custom_call.1}
  #allocation0 [shape = 'u32[]', space=smem, size = 0x4, offset = 0x4, fixed_abs, tag = 'smem constant byte address 0x4 - core index']
  #allocation1 [shape = 'u32[144,128]{1,0:T(1,128)}', space=vmem, size = 0x12000, scoped, tag = 'internal scratch']
  %s0 = inlined_call_operand.hbm [shape: f32[8,128], index: 0, kind: input, shape index: {}]
  %s1 = inlined_call_operand.hbm [shape: f32[8,128], index: 1, kind: output, shape index: {}]
  %s2 = sld [smem:[#allocation0]]
  $region18: #{tpu_custom_call.1} parent=0
    _
  %s4 = ssub.s32 1, %s2
  %s5 = scalar_select 0, %s4, %s2
  $region1: #{tpu_custom_call.1} parent=0
    #allocation2 [shape = 'u8[4096]{0}', space=vmem, size = 0x1000, scoped, tag = 'input window, operand 0, single buffered']
    #allocation3 [shape = 's32[1]{0}', space=sflag, size = 0x4, scoped, tag = 'scoped memory for tpu_custom_call.1']
    #allocation4 [shape = 's32[1]{0}', space=sflag, size = 0x4, scoped, tag = 'scoped memory for tpu_custom_call.1']
    #allocation5 [shape = 'u8[4096]{0}', space=vmem, size = 0x1000, scoped, tag = 'output window, operand 0, single buffered']
    %6 = vsyncpa [#allocation3], 0
    %7 = vsyncpa [#allocation4], 0
    // Predicated region
    $region2: #{tpu_custom_call.1} parent=1 // pred_check
      _
    $region3: #{tpu_custom_call.1} parent=1 // pred_check_branch
      %9 = sbr.rel (0) target = $region5
    $region4: #{tpu_custom_call.1} parent=1 // pred_region
      %s11 = ssub.s32 128, 128
      %12 = vsyncadd [#allocation3], %s11
      %s14 = sshll.u32 [#allocation2], 4
      %s15 = int_to_ptr.vmem [resolvable:$true] %s14
      %17 = dma.hbm_to_vmem [thread:$0]  %s0, 128, %s15, [#allocation3]
    $region5: #{tpu_custom_call.1} parent=1 // pred_fallthru
      _
    // Predicated region
    $region6: #{tpu_custom_call.1} parent=1 // pred_check
      _
    $region7: #{tpu_custom_call.1} parent=1 // pred_check_branch
      %19 = sbr.rel (0) target = $region9
    $region8: #{tpu_custom_call.1} parent=1 // pred_region
      %20 = dma.done [#allocation3], 128
    $region9: #{tpu_custom_call.1} parent=1 // pred_fallthru
      _
    %v21 = vld [vmem:[#allocation2] sm:$0xff]
    %22 = vrot.lane.b32.xlu0 %v21, 1
    %v23 = vpop.permute.xlu0 %22
    %24 = vst [vmem:[#allocation5] sm:$0xff] %v23
    // Predicated region
    $region10: #{tpu_custom_call.1} parent=1 // pred_check
      _
    $region11: #{tpu_custom_call.1} parent=1 // pred_check_branch
      %26 = sbr.rel (0) target = $region13
    $region12: #{tpu_custom_call.1} parent=1 // pred_region
      %s28 = ssub.s32 128, 128
      %29 = vsyncadd [#allocation4], %s28
      %s31 = sshll.u32 [#allocation5], 4
      %s32 = int_to_ptr.vmem [resolvable:$true] %s31
      %34 = dma.vmem_to_hbm [thread:$0]  %s32, 128, %s1, [#allocation4]
    $region13: #{tpu_custom_call.1} parent=1 // pred_fallthru
      _
    // Predicated region
    $region14: #{tpu_custom_call.1} parent=1 // pred_check
      _
    $region15: #{tpu_custom_call.1} parent=1 // pred_check_branch
      %36 = sbr.rel (0) target = $region17
    $region16: #{tpu_custom_call.1} parent=1 // pred_region
      %37 = dma.done [#allocation4], 128
    $region17: #{tpu_custom_call.1} parent=1 // pred_fallthru
      _
    %38 = vsyncpa [#allocation3], 1
    %39 = vsyncpa [#allocation4], 1

</llo_original>
